<compile_context>
chip_gen: v7x
topology: tpu7x:2x2x1
jax: 0.10.0
libtpu: 0.0.40
codegen_flags: <defaults>
</compile_context>

<pallas_src>
import jax
import jax.numpy as jnp
from jax.experimental import pallas as pl
from jax.experimental.pallas import tpu as pltpu


# ----------------------------------------------------------------------------
# Pass 1: conv (in-kernel tap accumulation) + masked per-tile BN partial sums
# ----------------------------------------------------------------------------
def _make_conv_stats_kernel(k, wp, mt):
    def kernel(x0_ref, x1_ref, w_ref, mask_ref, y_ref, stats_ref):
        # x0_ref, x1_ref: [Cin, MT] f32  -- consecutive blocks of the margin-padded
        #                                  flat input (x1 supplies the conv halo)
        # w_ref:    [Cout, k*k*Cin] bf16 -- resident (index_map -> (0, 0))
        # mask_ref: [1, MT] f32          -- 1.0 inside the image, 0.0 on pad/tail
        # y_ref:    [Cout, MT] f32       -- masked conv output (lane-dense)
        # stats_ref:[1, Cout, 2] f32     -- per-tile (sum, sum_sq) per channel
        xc = jnp.concatenate([x0_ref[...], x1_ref[...]], axis=1)     # [Cin, 2*MT]

        # Build the [k*k*Cin, MT] patch block with static shifted slices
        # (tap offset in flat coords = kh*Wp + kw); one MXU matmul with K=k*k*Cin.
        taps = []
        for kh in range(k):
            for kw in range(k):
                off = kh * wp + kw
                taps.append(xc[:, off:off + mt])
        patches = jnp.concatenate(taps, axis=0).astype(jnp.bfloat16)  # [K, MT]

        y = jnp.dot(w_ref[...], patches,
                    preferred_element_type=jnp.float32)               # [Cout, MT]
        # Conv bias intentionally omitted: BN mean subtraction cancels it exactly
        # and it does not change the variance.
        ym = y * mask_ref[...]        # zero out halo/garbage/tail columns
        y_ref[...] = ym

        s1 = jnp.sum(ym, axis=1, keepdims=True)                       # [Cout, 1]
        s2 = jnp.sum(ym * ym, axis=1, keepdims=True)                  # [Cout, 1]
        stats_ref[0] = jnp.concatenate([s1, s2], axis=1)              # [Cout, 2]
    return kernel


# ----------------------------------------------------------------------------
# Pass 2: BN affine (precomputed per-channel scale/shift) + LeakyReLU(0.2)
# ----------------------------------------------------------------------------
def _bn_act_kernel(y_ref, scale_ref, shift_ref, o_ref):
    # y_ref: [Cout, MT] f32; scale_ref/shift_ref: [Cout, 1] f32 (resident)
    z = y_ref[...] * scale_ref[...] + shift_ref[...]
    o_ref[...] = jnp.maximum(z, 0.2 * z)          # LeakyReLU(0.2)


# ----------------------------------------------------------------------------
# Wrapper: NCHW interface, layout plumbing in plain JAX
# ----------------------------------------------------------------------------
def upsample_block_forward(x_nchw, w, b, gamma, beta, *, eps=1e-5, mt=512):
    """Upsample(x2, bilinear) -> Conv2d(k, stride 1, pad (k-1)//2) -> BN -> LeakyReLU(0.2).

    x_nchw: [N, C_in, H, W];  w: [C_out, C_in, k, k];  b, gamma, beta: [C_out]
    Returns [N, C_out, 2H, 2W] float32.
    """
    N, Cin, H, W = x_nchw.shape
    Cout, Cin_w, k, k2 = w.shape
    assert Cin_w == Cin and k == k2 and (k % 2 == 1)
    p = (k - 1) // 2

    # 1) 2x bilinear upsample.
    # TODO(synk): the resize stays in XLA glue (pure data movement/interpolation);
    # it could be folded into the kernel as fractional taps if it ever dominates.
    H2, W2 = 2 * H, 2 * W
    x_up = jax.image.resize(x_nchw.astype(jnp.float32), (N, Cin, H2, W2),
                            method="bilinear")

    # 2) channels-major, spatially zero-padded, flattened layout:
    #    x_flat[ci, m], m = n*Hp*Wp + hp*Wp + wp
    Hp, Wp = H2 + 2 * p, W2 + 2 * p
    Mp = N * Hp * Wp
    x_pad = jnp.pad(jnp.transpose(x_up, (1, 0, 2, 3)),
                    ((0, 0), (0, 0), (p, p), (p, p)))
    x_flat = x_pad.reshape(Cin, Mp)

    margin = p * Wp + p                      # max tap offset in flat coords
    assert 2 * margin <= mt, "tile (mt) must cover the conv halo (2*(p*Wp+p))"
    T = pl.cdiv(Mp, mt)
    Mpad = T * mt
    # Column j of xbuf holds x_flat[:, j - margin]; (T+1) blocks so block i+1 is
    # always a valid halo fetch for tile i.
    xbuf = jnp.pad(x_flat, ((0, 0), (margin, (T + 1) * mt - margin - Mp)))

    # Validity mask over padded/flattened output positions.
    mask = jnp.pad(jnp.ones((N, H2, W2), jnp.float32),
                   ((0, 0), (p, p), (p, p))).reshape(Mp)
    mask = jnp.pad(mask, (0, Mpad - Mp)).reshape(1, Mpad)

    # Conv weight -> [Cout, k*k*Cin], tap-major / input-channel-minor, bf16 MXU operand.
    w_t = jnp.transpose(w, (0, 2, 3, 1)).reshape(Cout, k * k * Cin).astype(jnp.bfloat16)
    # b is accepted for interface parity but not used (cancelled by BN, see kernel).

    cparams = pltpu.CompilerParams(
        dimension_semantics=("parallel",),          # tiles fully independent
        vmem_limit_bytes=32 * 1024 * 1024,          # explicit, fits v5e/v6e/v7x
    )

    kernel1 = _make_conv_stats_kernel(k, Wp, mt)
    y_flat, stats = pl.pallas_call(
        kernel1,
        grid_spec=pltpu.PrefetchScalarGridSpec(
            num_scalar_prefetch=0,
            grid=(T,),
            in_specs=[
                pl.BlockSpec((Cin, mt), lambda i: (0, i)),          # x block i
                pl.BlockSpec((Cin, mt), lambda i: (0, i + 1)),      # x block i+1 (halo)
                pl.BlockSpec((Cout, k * k * Cin), lambda i: (0, 0)),  # weights (resident)
                pl.BlockSpec((1, mt), lambda i: (0, i)),            # validity mask
            ],
            out_specs=[
                pl.BlockSpec((Cout, mt), lambda i: (0, i)),         # masked y
                pl.BlockSpec((1, Cout, 2), lambda i: (i, 0, 0)),    # per-tile partials
            ],
        ),
        out_shape=(
            jax.ShapeDtypeStruct((Cout, Mpad), jnp.float32),
            jax.ShapeDtypeStruct((T, Cout, 2), jnp.float32),
        ),
        compiler_params=cparams,
    )(xbuf, xbuf, w_t, mask)

    # 3) Global BN statistics (tiny [T,Cout,2] combine + 8-channel scale/shift,
    #    hoisted once out of the tile loop).  f32 sum/sum_sq accumulation; var is
    #    clamped at 0 to guard E[y^2]-E[y]^2 cancellation.
    count = float(N * H2 * W2)
    sums = jnp.sum(stats, axis=0)                                    # [Cout, 2]
    mean = sums[:, 0] / count
    var = jnp.maximum(sums[:, 1] / count - mean * mean, 0.0)         # biased var
    scale = gamma.astype(jnp.float32) * jax.lax.rsqrt(var + eps)     # [Cout]
    shift = beta.astype(jnp.float32) - mean * scale                  # [Cout]
    scale = scale.reshape(Cout, 1)
    shift = shift.reshape(Cout, 1)

    out_flat = pl.pallas_call(
        _bn_act_kernel,
        grid_spec=pltpu.PrefetchScalarGridSpec(
            num_scalar_prefetch=0,
            grid=(T,),
            in_specs=[
                pl.BlockSpec((Cout, mt), lambda i: (0, i)),
                pl.BlockSpec((Cout, 1), lambda i: (0, 0)),
                pl.BlockSpec((Cout, 1), lambda i: (0, 0)),
            ],
            out_specs=pl.BlockSpec((Cout, mt), lambda i: (0, i)),
        ),
        out_shape=jax.ShapeDtypeStruct((Cout, Mpad), jnp.float32),
        input_output_aliases={0: 0},        # write the affine result in place of y
        compiler_params=cparams,
    )(y_flat, scale, shift)

    # 4) Un-flatten: [Cout, Mpad] -> crop tail/pad -> NCHW.
    out = out_flat[:, :Mp].reshape(Cout, N, Hp, Wp)[:, :, p:p + H2, p:p + W2]
    return jnp.transpose(out, (1, 0, 2, 3))


# ----------------------------------------------------------------------------
# Plain-JAX reference (module semantics, f32) for the self-check
# ----------------------------------------------------------------------------
def _reference_forward(x_nchw, w, b, gamma, beta, eps=1e-5):
    N, Cin, H, W = x_nchw.shape
    k = w.shape[-1]
    p = (k - 1) // 2
    x_up = jax.image.resize(x_nchw.astype(jnp.float32), (N, Cin, 2 * H, 2 * W),
                            method="bilinear")
    y = jax.lax.conv_general_dilated(
        x_up, w.astype(jnp.float32), window_strides=(1, 1),
        padding=[(p, p), (p, p)],
        dimension_numbers=("NCHW", "OIHW", "NCHW"),
    ) + b.reshape(1, -1, 1, 1)
    mean = jnp.mean(y, axis=(0, 2, 3), keepdims=True)
    var = jnp.mean((y - mean) ** 2, axis=(0, 2, 3), keepdims=True)
    z = (y - mean) * jax.lax.rsqrt(var + eps)
    z = z * gamma.reshape(1, -1, 1, 1) + beta.reshape(1, -1, 1, 1)
    return jnp.maximum(z, 0.2 * z)


if __name__ == "__main__":
    # UpsampleBlock(in_channel=4, out_channel=8): x2 upsample + 3x3 conv + BN + LeakyReLU
    N, Cin, H, W = 2, 4, 16, 16
    Cout, k = 8, 3

    key = jax.random.PRNGKey(0)
    kx, kw, kb = jax.random.split(key, 3)
    x = jax.random.normal(kx, (N, Cin, H, W), dtype=jnp.float32)
    w = 0.1 * jax.random.normal(kw, (Cout, Cin, k, k), dtype=jnp.float32)
    b = 0.1 * jax.random.normal(kb, (Cout,), dtype=jnp.float32)
    gamma = jnp.ones((Cout,), dtype=jnp.float32)    # fresh BatchNorm2d init
    beta = jnp.zeros((Cout,), dtype=jnp.float32)

    fwd = jax.jit(upsample_block_forward)
    out = jax.block_until_ready(fwd(x, w, b, gamma, beta))
    ref = jax.block_until_ready(_reference_forward(x, w, b, gamma, beta))

    assert out.shape == (N, Cout, 2 * H, 2 * W)
    # bf16 MXU operands in the kernel vs the f32 reference -> relaxed tolerance.
    max_err = float(jnp.max(jnp.abs(out - ref)))
    assert jnp.allclose(out, ref, atol=5e-2, rtol=5e-2), f"mismatch, max_err={max_err}"

    print("KERNEL_OK")
</pallas_src>

<mosaic_0001>
module attributes {stable_mosaic.version = 11 : i64} {
  func.func @kernel(%arg0: i32, %arg1: memref<4x512xf32, #tpu.memory_space<vmem>>, %arg2: memref<4x512xf32, #tpu.memory_space<vmem>>, %arg3: memref<8x36xbf16, #tpu.memory_space<vmem>>, %arg4: memref<1x512xf32, #tpu.memory_space<vmem>>, %arg5: memref<8x512xf32, #tpu.memory_space<vmem>>, %arg6: memref<1x8x2xf32, #tpu.memory_space<vmem>>) attributes {dimension_semantics = [#tpu.dimension_semantics<parallel>], iteration_bounds = array<i64: 5>, scalar_prefetch = 0 : i64, scratch_operands = 0 : i64, tpu.core_type = #tpu.core_type<tc>, window_params = [{transform_indices = @transform_0, window_bounds = array<i64: 4, 512>}, {transform_indices = @transform_1, window_bounds = array<i64: 4, 512>}, {pipeline_mode = #tpu.pipeline_mode<synchronous>, transform_indices = @transform_2, window_bounds = array<i64: 8, 36>}, {transform_indices = @transform_3, window_bounds = array<i64: 1, 512>}, {transform_indices = @transform_4, window_bounds = array<i64: 8, 512>}, {transform_indices = @transform_5, window_bounds = array<i64: 1, 8, 2>}]} {
    %c0 = arith.constant 0 : index
    %c0_0 = arith.constant 0 : index
    %0 = vector.load %arg1[%c0, %c0_0] : memref<4x512xf32, #tpu.memory_space<vmem>>, vector<4x512xf32>
    %c0_1 = arith.constant 0 : index
    %c0_2 = arith.constant 0 : index
    %1 = vector.load %arg2[%c0_1, %c0_2] : memref<4x512xf32, #tpu.memory_space<vmem>>, vector<4x512xf32>
    %2 = tpu.concatenate %0, %1 in 1 : vector<4x512xf32>, vector<4x512xf32> -> vector<4x1024xf32>
    %3 = vector.extract_strided_slice %2 {offsets = [0, 0], sizes = [4, 512], strides = [1, 1]} : vector<4x1024xf32> to vector<4x512xf32>
    %4 = vector.extract_strided_slice %2 {offsets = [0, 1], sizes = [4, 512], strides = [1, 1]} : vector<4x1024xf32> to vector<4x512xf32>
    %5 = vector.extract_strided_slice %2 {offsets = [0, 2], sizes = [4, 512], strides = [1, 1]} : vector<4x1024xf32> to vector<4x512xf32>
    %6 = vector.extract_strided_slice %2 {offsets = [0, 34], sizes = [4, 512], strides = [1, 1]} : vector<4x1024xf32> to vector<4x512xf32>
    %7 = vector.extract_strided_slice %2 {offsets = [0, 35], sizes = [4, 512], strides = [1, 1]} : vector<4x1024xf32> to vector<4x512xf32>
    %8 = vector.extract_strided_slice %2 {offsets = [0, 36], sizes = [4, 512], strides = [1, 1]} : vector<4x1024xf32> to vector<4x512xf32>
    %9 = vector.extract_strided_slice %2 {offsets = [0, 68], sizes = [4, 512], strides = [1, 1]} : vector<4x1024xf32> to vector<4x512xf32>
    %10 = vector.extract_strided_slice %2 {offsets = [0, 69], sizes = [4, 512], strides = [1, 1]} : vector<4x1024xf32> to vector<4x512xf32>
    %11 = vector.extract_strided_slice %2 {offsets = [0, 70], sizes = [4, 512], strides = [1, 1]} : vector<4x1024xf32> to vector<4x512xf32>
    %12 = tpu.concatenate %3, %4, %5, %6, %7, %8, %9, %10, %11 in 0 : vector<4x512xf32>, vector<4x512xf32>, vector<4x512xf32>, vector<4x512xf32>, vector<4x512xf32>, vector<4x512xf32>, vector<4x512xf32>, vector<4x512xf32>, vector<4x512xf32> -> vector<36x512xf32>
    %13 = arith.truncf %12 : vector<36x512xf32> to vector<36x512xbf16>
    %c0_3 = arith.constant 0 : index
    %c0_4 = arith.constant 0 : index
    %14 = vector.load %arg3[%c0_3, %c0_4] : memref<8x36xbf16, #tpu.memory_space<vmem>>, vector<8x36xbf16>
    %cst = arith.constant dense<0.000000e+00> : vector<8x512xf32>
    %15 = tpu.matmul %14, %13, %cst {dimension_numbers = #tpu.dot_dimension_numbers<[1], [0], [0], [1], [0, 0, 1, 1], [], []>} : vector<8x36xbf16>, vector<36x512xbf16>, vector<8x512xf32> -> vector<8x512xf32>
    %c0_5 = arith.constant 0 : index
    %c0_6 = arith.constant 0 : index
    %16 = vector.load %arg4[%c0_5, %c0_6] : memref<1x512xf32, #tpu.memory_space<vmem>>, vector<1x512xf32>
    %17 = vector.broadcast %16 : vector<1x512xf32> to vector<8x512xf32>
    %18 = arith.mulf %15, %17 : vector<8x512xf32>
    %c0_7 = arith.constant 0 : index
    %c0_8 = arith.constant 0 : index
    %19 = vector.load %arg5[%c0_7, %c0_8] : memref<8x512xf32, #tpu.memory_space<vmem>>, vector<8x512xf32>
    tpu.vector_store %arg5[%c0_7, %c0_8], %18 {strides = array<i32>} : memref<8x512xf32, #tpu.memory_space<vmem>>, vector<8x512xf32>,
    %cst_9 = arith.constant dense<0.000000e+00> : vector<8xf32>
    %20 = vector.multi_reduction <add>, %18, %cst_9 [1] : vector<8x512xf32> to vector<8xf32>
    %21 = vector.shape_cast %20 : vector<8xf32> to vector<8x1xf32>
    %22 = arith.mulf %18, %18 : vector<8x512xf32>
    %cst_10 = arith.constant dense<0.000000e+00> : vector<8xf32>
    %23 = vector.multi_reduction <add>, %22, %cst_10 [1] : vector<8x512xf32> to vector<8xf32>
    %24 = vector.shape_cast %23 : vector<8xf32> to vector<8x1xf32>
    %25 = tpu.concatenate %21, %24 in 1 : vector<8x1xf32>, vector<8x1xf32> -> vector<8x2xf32>
    %c0_11 = arith.constant 0 : index
    %c0_12 = arith.constant 0 : index
    %c0_13 = arith.constant 0 : index
    %26 = vector.load %arg6[%c0_11, %c0_12, %c0_13] : memref<1x8x2xf32, #tpu.memory_space<vmem>>, vector<1x8x2xf32>
    %27 = vector.shape_cast %26 : vector<1x8x2xf32> to vector<8x2xf32>
    %28 = vector.shape_cast %25 : vector<8x2xf32> to vector<1x8x2xf32>
    tpu.vector_store %arg6[%c0_11, %c0_12, %c0_13], %28 {strides = array<i32>} : memref<1x8x2xf32, #tpu.memory_space<vmem>>, vector<1x8x2xf32>,
    return
  }
  func.func @transform_0(%arg0: i32) -> (i32, i32) {
    %c0_i32 = arith.constant 0 : i32
    %c0_i32_0 = arith.constant 0 : i32
    return %c0_i32, %arg0 : i32, i32
  }
  func.func @transform_1(%arg0: i32) -> (i32, i32) {
    %c1_i32 = arith.constant 1 : i32
    %0 = arith.addi %arg0, %c1_i32 : i32
    %c0_i32 = arith.constant 0 : i32
    %c0_i32_0 = arith.constant 0 : i32
    return %c0_i32, %0 : i32, i32
  }
  func.func @transform_2(%arg0: i32) -> (i32, i32) {
    %c0_i32 = arith.constant 0 : i32
    %c0_i32_0 = arith.constant 0 : i32
    %c0_i32_1 = arith.constant 0 : i32
    return %c0_i32, %c0_i32_0 : i32, i32
  }
  func.func @transform_3(%arg0: i32) -> (i32, i32) {
    %c0_i32 = arith.constant 0 : i32
    %c0_i32_0 = arith.constant 0 : i32
    return %c0_i32, %arg0 : i32, i32
  }
  func.func @transform_4(%arg0: i32) -> (i32, i32) {
    %c0_i32 = arith.constant 0 : i32
    %c0_i32_0 = arith.constant 0 : i32
    return %c0_i32, %arg0 : i32, i32
  }
  func.func @transform_5(%arg0: i32) -> (i32, i32, i32) {
    %c0_i32 = arith.constant 0 : i32
    %c0_i32_0 = arith.constant 0 : i32
    %c0_i32_1 = arith.constant 0 : i32
    return %arg0, %c0_i32, %c0_i32_0 : i32, i32, i32
  }
}

module attributes {stable_mosaic.version = 11 : i64} {
  func.func @_bn_act_kernel(%arg0: i32, %arg1: memref<8x512xf32, #tpu.memory_space<vmem>>, %arg2: memref<8x1xf32, #tpu.memory_space<vmem>>, %arg3: memref<8x1xf32, #tpu.memory_space<vmem>>, %arg4: memref<8x512xf32, #tpu.memory_space<vmem>>) attributes {dimension_semantics = [#tpu.dimension_semantics<parallel>], iteration_bounds = array<i64: 5>, scalar_prefetch = 0 : i64, scratch_operands = 0 : i64, tpu.core_type = #tpu.core_type<tc>, window_params = [{transform_indices = @transform_0, window_bounds = array<i64: 8, 512>}, {pipeline_mode = #tpu.pipeline_mode<synchronous>, transform_indices = @transform_1, window_bounds = array<i64: 8, 1>}, {pipeline_mode = #tpu.pipeline_mode<synchronous>, transform_indices = @transform_2, window_bounds = array<i64: 8, 1>}, {transform_indices = @transform_3, window_bounds = array<i64: 8, 512>}]} {
    %c0 = arith.constant 0 : index
    %c0_0 = arith.constant 0 : index
    %0 = vector.load %arg1[%c0, %c0_0] : memref<8x512xf32, #tpu.memory_space<vmem>>, vector<8x512xf32>
    %c0_1 = arith.constant 0 : index
    %c0_2 = arith.constant 0 : index
    %1 = vector.load %arg2[%c0_1, %c0_2] : memref<8x1xf32, #tpu.memory_space<vmem>>, vector<8x1xf32>
    %2 = vector.broadcast %1 : vector<8x1xf32> to vector<8x512xf32>
    %3 = arith.mulf %0, %2 : vector<8x512xf32>
    %c0_3 = arith.constant 0 : index
    %c0_4 = arith.constant 0 : index
    %4 = vector.load %arg3[%c0_3, %c0_4] : memref<8x1xf32, #tpu.memory_space<vmem>>, vector<8x1xf32>
    %5 = vector.broadcast %4 : vector<8x1xf32> to vector<8x512xf32>
    %6 = arith.addf %3, %5 : vector<8x512xf32>
    %cst = arith.constant 2.000000e-01 : f32
    %7 = vector.broadcast %cst : f32 to vector<8x512xf32>
    %8 = arith.mulf %7, %6 : vector<8x512xf32>
    %9 = arith.maximumf %6, %8 : vector<8x512xf32>
    %c0_5 = arith.constant 0 : index
    %c0_6 = arith.constant 0 : index
    %10 = vector.load %arg4[%c0_5, %c0_6] : memref<8x512xf32, #tpu.memory_space<vmem>>, vector<8x512xf32>
    tpu.vector_store %arg4[%c0_5, %c0_6], %9 {strides = array<i32>} : memref<8x512xf32, #tpu.memory_space<vmem>>, vector<8x512xf32>,
    return
  }
  func.func @transform_0(%arg0: i32) -> (i32, i32) {
    %c0_i32 = arith.constant 0 : i32
    %c0_i32_0 = arith.constant 0 : i32
    return %c0_i32, %arg0 : i32, i32
  }
  func.func @transform_1(%arg0: i32) -> (i32, i32) {
    %c0_i32 = arith.constant 0 : i32
    %c0_i32_0 = arith.constant 0 : i32
    %c0_i32_1 = arith.constant 0 : i32
    return %c0_i32, %c0_i32_0 : i32, i32
  }
  func.func @transform_2(%arg0: i32) -> (i32, i32) {
    %c0_i32 = arith.constant 0 : i32
    %c0_i32_0 = arith.constant 0 : i32
    %c0_i32_1 = arith.constant 0 : i32
    return %c0_i32, %c0_i32_0 : i32, i32
  }
  func.func @transform_3(%arg0: i32) -> (i32, i32) {
    %c0_i32 = arith.constant 0 : i32
    %c0_i32_0 = arith.constant 0 : i32
    return %c0_i32, %arg0 : i32, i32
  }
}

</mosaic_0001>

<llo_original>
// kernel: upsample_block_forward.3
$region0: #{upsample_block_forward.3}
  #allocation0 [shape = 'u32[]', space=smem, size = 0x4, offset = 0x4, fixed_abs, tag = 'smem constant byte address 0x4 - core index']
  #allocation1 [shape = 'u32[144,128]{1,0:T(1,128)}', space=vmem, size = 0x12000, scoped, tag = 'internal scratch']
  %s0 = inlined_call_operand.vmem [shape: f32[8,2560], index: 0, kind: input, shape index: {}, may-alias: {0,3}]
  %s1 = inlined_call_operand.vmem [shape: f32[8,1], index: 1, kind: input, shape index: {}]
  %s2 = inlined_call_operand.vmem [shape: f32[8,1], index: 2, kind: input, shape index: {}]
  %s3 = inlined_call_operand.vmem [shape: f32[8,2560], index: 3, kind: output, shape index: {}, may-alias: {0,3}]
  %s4 = sld [smem:[#allocation0]]
  $region45: #{upsample_block_forward.3} parent=0
    _
  %s6 = ssub.s32 1, %s4
  %s7 = scalar_select 0, %s6, %s4
  loop: start=0, step=1, limit=7
  $region2: #{upsample_block_forward.3} parent=0 // loop_pre_header
    _
  $region3: #{upsample_block_forward.3} parent=0 // loop_header
    %s9 = sphi 0, %s13
    %p10 = scmp.ge.s32.totalorder %s9, 7
    %s19 = sphi 0, %s21
    %s22 = sphi 0, %s19
    %s23 = sphi 0, %s22
    %s39 = sphi 0, %s23
    %s43 = sphi 0, %s43
    %s45 = sphi 0, %s43
    %s46 = sphi 0, %s45
    %s60 = sphi 0, %s46
    %s64 = sphi 0, %s64
    %s66 = sphi 0, %s64
    %s67 = sphi 0, %s66
    %s81 = sphi 0, %s67
    %s87 = sphi 0, %s89
    %s90 = sphi 0, %s87
    %s91 = sphi 0, %s90
    %s107 = sphi 0, %s91
  $region4: #{upsample_block_forward.3} parent=0 // loop_header_branch
    %12 = sbr.rel (%p10) target = $region8
  $region5: #{upsample_block_forward.3} parent=0 // loop_body
    %s14 = ssub.s32 %s9, 1
    %s15 = ssub.s32 %s9, 2
    %s16 = sadd.s32 %s9, 1
    %s17 = ssub.s32 %s9, %s16
    %p18 = scmp.eq.s32.totalorder %s17, 0
    %s20 = sadd.s32 %s19, 1
    %s21 = scalar_select %p18, %s19, %s20
    %p24 = pneg %p18
    %p25 = scmp.eq.s32.totalorder %s9, 4
    %p26 = por %p24, %p25
    %p27 = scmp.ne.s32.totalorder %s19, %s22
    %p28 = scmp.eq.s32.totalorder %s9, 0
    %p29 = por %p27, %p28
    %p30 = scmp.ne.s32.totalorder %s19, %s22
    %p31 = scmp.eq.s32.totalorder %s14, 4
    %p32 = por %p30, %p31
    %p33 = scmp.ne.s32.totalorder %s22, %s23
    %p34 = scmp.eq.s32.totalorder %s14, 0
    %p35 = por %p33, %p34
    %p36 = scmp.ne.s32.totalorder %s22, %s23
    %p37 = scmp.eq.s32.totalorder %s15, 4
    %p38 = por %p36, %p37
    %p40 = scmp.ne.s32.totalorder %s23, %s39
    %p41 = scmp.eq.s32.totalorder %s15, 0
    %p42 = por %p40, %p41
    %s44 = sadd.s32 %s43, 1
    %p47 = scmp.eq.s32.totalorder %s9, 4
    %p48 = scmp.ne.s32.totalorder %s43, %s45
    %p49 = scmp.eq.s32.totalorder %s9, 0
    %p50 = por %p48, %p49
    %p51 = scmp.ne.s32.totalorder %s43, %s45
    %p52 = scmp.eq.s32.totalorder %s14, 4
    %p53 = por %p51, %p52
    %p54 = scmp.ne.s32.totalorder %s45, %s46
    %p55 = scmp.eq.s32.totalorder %s14, 0
    %p56 = por %p54, %p55
    %p57 = scmp.ne.s32.totalorder %s45, %s46
    %p58 = scmp.eq.s32.totalorder %s15, 4
    %p59 = por %p57, %p58
    %p61 = scmp.ne.s32.totalorder %s46, %s60
    %p62 = scmp.eq.s32.totalorder %s15, 0
    %p63 = por %p61, %p62
    %s65 = sadd.s32 %s64, 1
    %p68 = scmp.eq.s32.totalorder %s9, 4
    %p69 = scmp.ne.s32.totalorder %s64, %s66
    %p70 = scmp.eq.s32.totalorder %s9, 0
    %p71 = por %p69, %p70
    %p72 = scmp.ne.s32.totalorder %s64, %s66
    %p73 = scmp.eq.s32.totalorder %s14, 4
    %p74 = por %p72, %p73
    %p75 = scmp.ne.s32.totalorder %s66, %s67
    %p76 = scmp.eq.s32.totalorder %s14, 0
    %p77 = por %p75, %p76
    %p78 = scmp.ne.s32.totalorder %s66, %s67
    %p79 = scmp.eq.s32.totalorder %s15, 4
    %p80 = por %p78, %p79
    %p82 = scmp.ne.s32.totalorder %s67, %s81
    %p83 = scmp.eq.s32.totalorder %s15, 0
    %p84 = por %p82, %p83
    %s85 = ssub.s32 %s9, %s16
    %p86 = scmp.eq.s32.totalorder %s85, 0
    %s88 = sadd.s32 %s87, 1
    %s89 = scalar_select %p86, %s87, %s88
    %p92 = pneg %p86
    %p93 = scmp.eq.s32.totalorder %s9, 4
    %p94 = por %p92, %p93
    %p95 = scmp.ne.s32.totalorder %s87, %s90
    %p96 = scmp.eq.s32.totalorder %s9, 0
    %p97 = por %p95, %p96
    %p98 = scmp.ne.s32.totalorder %s87, %s90
    %p99 = scmp.eq.s32.totalorder %s14, 4
    %p100 = por %p98, %p99
    %p101 = scmp.ne.s32.totalorder %s90, %s91
    %p102 = scmp.eq.s32.totalorder %s14, 0
    %p103 = por %p101, %p102
    %p104 = scmp.ne.s32.totalorder %s90, %s91
    %p105 = scmp.eq.s32.totalorder %s15, 4
    %p106 = por %p104, %p105
    %p108 = scmp.ne.s32.totalorder %s91, %s107
    %p109 = scmp.eq.s32.totalorder %s15, 0
    %p110 = por %p108, %p109
    %p111 = scmp.le.s32.totalorder 1, %s9
    %p112 = scmp.lt.s32.totalorder %s9, 6
    %p113 = pnand %p111, %p112
    %p114 = pneg %p113
    // Predicated region
    $region9: #{upsample_block_forward.3} parent=5 // pred_check
      _
    $region10: #{upsample_block_forward.3} parent=5 // pred_check_branch
      %116 = sbr.rel (%p113) target = $region12
    $region11: #{upsample_block_forward.3} parent=5 // pred_region
      %s117 = ssub.s32 %s9, 1
      // Predicated region
      $region13: #{upsample_block_forward.3} parent=11 // pred_check
        %p118 = pneg %p56
      $region14: #{upsample_block_forward.3} parent=11 // pred_check_branch
        %120 = sbr.rel (%p118) target = $region16
      $region15: #{upsample_block_forward.3} parent=11 // pred_region
        _
      $region16: #{upsample_block_forward.3} parent=11 // pred_fallthru
        _
      // Predicated region
      $region17: #{upsample_block_forward.3} parent=11 // pred_check
        %p121 = pneg %p77
      $region18: #{upsample_block_forward.3} parent=11 // pred_check_branch
        %123 = sbr.rel (%p121) target = $region20
      $region19: #{upsample_block_forward.3} parent=11 // pred_region
        _
      $region20: #{upsample_block_forward.3} parent=11 // pred_fallthru
        _
    $region12: #{upsample_block_forward.3} parent=5 // pred_fallthru
      _
    %p124 = scmp.lt.s32.totalorder %s9, 5
    // Predicated region
    $region21: #{upsample_block_forward.3} parent=5 // pred_check
      %p125 = pneg %p124
    $region22: #{upsample_block_forward.3} parent=5 // pred_check_branch
      %127 = sbr.rel (%p125) target = $region24
    $region23: #{upsample_block_forward.3} parent=5 // pred_region
      // Predicated region
      $region25: #{upsample_block_forward.3} parent=23 // pred_check
        %p128 = pneg %p29
      $region26: #{upsample_block_forward.3} parent=23 // pred_check_branch
        %130 = sbr.rel (%p128) target = $region28
      $region27: #{upsample_block_forward.3} parent=23 // pred_region
        %s131 = smul.u32 4, %s9
        %p132 = scmp.lt.s32.totalorder %s131, 19
        %s133 = scalar_select %p132, %s131, 19
        %s134 = smul.addr %s133, 8
        %s135 = scalar_lea.vmem %s0, %s134
        %s136 = smul.u32 4, %s9
      $region28: #{upsample_block_forward.3} parent=23 // pred_fallthru
        _
    $region24: #{upsample_block_forward.3} parent=5 // pred_fallthru
      _
    %p137 = scmp.le.s32.totalorder 1, %s9
    %p138 = scmp.lt.s32.totalorder %s9, 6
    %p139 = pnand %p137, %p138
    %p140 = pneg %p139
    // Predicated region
    $region29: #{upsample_block_forward.3} parent=5 // pred_check
      _
    $region30: #{upsample_block_forward.3} parent=5 // pred_check_branch
      %142 = sbr.rel (%p139) target = $region32
    $region31: #{upsample_block_forward.3} parent=5 // pred_region
      %s143 = ssub.s32 %s9, 1
      %s144 = smul.u32 4, %s14
      %p145 = scmp.lt.s32.totalorder %s144, 19
      %s146 = scalar_select %p145, %s144, 19
      %s147 = smul.addr %s146, 8
      %s148 = scalar_lea.vmem %s0, %s147
      %p149 = pneg %p35
      %p150 = pneg %p32
      %p151 = pneg %p56
      %p152 = pneg %p53
      %p153 = pneg %p77
      %p154 = pneg %p74
      %p155 = pneg %p103
      %p156 = pneg %p100
      %s157 = smul.u32 4, %s14
      %p158 = scmp.lt.s32.totalorder %s157, 19
      %s159 = scalar_select %p158, %s157, 19
      %s160 = smul.addr %s159, 8
      %s161 = scalar_lea.vmem %s3, %s160
      %s162 = smul.u32 4, %s14
      %p163 = scmp.lt.s32.totalorder %s162, 19
      %s164 = scalar_select %p163, %s162, 19
      %s165 = smul.addr %s164, 8
      %s166 = scalar_lea.vmem %s0, %s165
      %s167 = smul.u32 4, %s14
      %s168 = smul.u32 4, %s14
      %p169 = scmp.lt.s32.totalorder %s168, 19
      %s170 = scalar_select %p169, %s168, 19
      %s171 = smul.addr %s170, 8
      %s172 = scalar_lea.vmem %s3, %s171
      %s173 = smul.u32 4, %s14
      %v174 = vld [vmem:[%s166] sm:$0xff]
      %v175 = vld [vmem:[%s166 + $0x8] sm:$0xff]
      %v176 = vld [vmem:[%s166 + $0x10] sm:$0xff]
      %v177 = vld [vmem:[%s166 + $0x18] sm:$0xff]
      %v178 = vld [vmem:[%s1] sm:$0xff]
      %180 = vset.pattern.permute.xlu0 0
      %181 = vperm.xlu0 %180, %v178
      %v182 = vpop.permute.xlu0 %181
      %v184 = vmul.f32 %v174, %v182
      %v185 = vmul.f32 %v175, %v182
      %v186 = vmul.f32 %v176, %v182
      %v187 = vmul.f32 %v177, %v182
      %v188 = vld [vmem:[%s2] sm:$0xff]
      %190 = vset.pattern.permute.xlu0 0
      %191 = vperm.xlu0 %190, %v188
      %v192 = vpop.permute.xlu0 %191
      %v194 = vadd.f32 %v184, %v192
      %v195 = vadd.f32 %v185, %v192
      %v196 = vadd.f32 %v186, %v192
      %v197 = vadd.f32 %v187, %v192
      %v198 = vmul.f32 %v194, 0.2
      %v199 = vmul.f32 %v195, 0.2
      %v200 = vmul.f32 %v196, 0.2
      %v201 = vmul.f32 %v197, 0.2
      %v202 = vmax.f32 %v194, %v198
      %v203 = vmax.f32 %v195, %v199
      %v204 = vmax.f32 %v196, %v200
      %v205 = vmax.f32 %v197, %v201
      %206 = vst [vmem:[%s172] sm:$0xff] %v202
      %207 = vst [vmem:[%s172 + $0x8] sm:$0xff] %v203
      %208 = vst [vmem:[%s172 + $0x10] sm:$0xff] %v204
      %209 = vst [vmem:[%s172 + $0x18] sm:$0xff] %v205
      %s210 = smul.u32 4, %s14
      %p211 = scmp.lt.s32.totalorder %s210, 19
      %s212 = scalar_select %p211, %s210, 19
      %s213 = smul.addr %s212, 8
      %s214 = scalar_lea.vmem %s3, %s213
      // Predicated region
      $region33: #{upsample_block_forward.3} parent=31 // pred_check
        %p215 = pneg %p100
      $region34: #{upsample_block_forward.3} parent=31 // pred_check_branch
        %217 = sbr.rel (%p215) target = $region36
      $region35: #{upsample_block_forward.3} parent=31 // pred_region
        %s218 = smul.u32 4, %s14
      $region36: #{upsample_block_forward.3} parent=31 // pred_fallthru
        _
    $region32: #{upsample_block_forward.3} parent=5 // pred_fallthru
      _
    %p219 = scmp.le.s32.totalorder 2, %s9
    // Predicated region
    $region37: #{upsample_block_forward.3} parent=5 // pred_check
      %p220 = pneg %p219
    $region38: #{upsample_block_forward.3} parent=5 // pred_check_branch
      %222 = sbr.rel (%p220) target = $region40
    $region39: #{upsample_block_forward.3} parent=5 // pred_region
      %s223 = ssub.s32 %s9, 2
      // Predicated region
      $region41: #{upsample_block_forward.3} parent=39 // pred_check
        %p224 = pneg %p106
      $region42: #{upsample_block_forward.3} parent=39 // pred_check_branch
        %226 = sbr.rel (%p224) target = $region44
      $region43: #{upsample_block_forward.3} parent=39 // pred_region
        %s227 = smul.u32 4, %s15
        %p228 = scmp.lt.s32.totalorder %s227, 19
        %s229 = scalar_select %p228, %s227, 19
        %s230 = smul.addr %s229, 8
        %s231 = scalar_lea.vmem %s3, %s230
      $region44: #{upsample_block_forward.3} parent=39 // pred_fallthru
        _
    $region40: #{upsample_block_forward.3} parent=5 // pred_fallthru
      _
  $region6: #{upsample_block_forward.3} parent=0 // loop_footer
    %s13 = sadd.s32 1, %s9
  $region7: #{upsample_block_forward.3} parent=0 // loop_footer_branch
    %8 = sbr.rel target = $region3
  $region8: #{upsample_block_forward.3} parent=0 // loop_exit
    _

// kernel: upsample_block_forward.2
$region0: #{upsample_block_forward.2}
  #allocation0 [shape = 'u32[]', space=smem, size = 0x4, offset = 0x4, fixed_abs, tag = 'smem constant byte address 0x4 - core index']
  #allocation1 [shape = 'u32[144,128]{1,0:T(1,128)}', space=vmem, size = 0x12000, scoped, tag = 'internal scratch']
  %s0 = inlined_call_operand.vmem [shape: f32[4,3072], index: 0, kind: input, shape index: {}, may-alias: {0,1}]
  %s1 = inlined_call_operand.vmem [shape: f32[4,3072], index: 1, kind: input, shape index: {}, may-alias: {0,1}]
  %s2 = inlined_call_operand.vmem [shape: bf16[8,36], index: 2, kind: input, shape index: {}]
  %s3 = inlined_call_operand.vmem [shape: f32[1,2560], index: 3, kind: input, shape index: {}]
  %s4 = inlined_call_operand.vmem [shape: f32[8,2560], index: 4, kind: output, shape index: {0}]
  %s5 = inlined_call_operand.vmem [shape: f32[5,8,2], index: 5, kind: output, shape index: {1}]
  %6 = xla_tuple %s4, %s5
  %s7 = sld [smem:[#allocation0]]
  $region57: #{upsample_block_forward.2} parent=0
    _
  %s9 = ssub.s32 1, %s7
  %s10 = scalar_select 0, %s9, %s7
  loop: start=0, step=1, limit=7
  $region2: #{upsample_block_forward.2} parent=0 // loop_pre_header
    _
  $region3: #{upsample_block_forward.2} parent=0 // loop_header
    %s12 = sphi 0, %s16
    %p13 = scmp.ge.s32.totalorder %s12, 7
    %s22 = sphi 0, %s24
    %s25 = sphi 0, %s22
    %s26 = sphi 0, %s25
    %s42 = sphi 0, %s26
    %s50 = sphi 0, %s52
    %s53 = sphi 0, %s50
    %s54 = sphi 0, %s53
    %s70 = sphi 0, %s54
    %s74 = sphi 0, %s74
    %s76 = sphi 0, %s74
    %s77 = sphi 0, %s76
    %s91 = sphi 0, %s77
    %s97 = sphi 0, %s99
    %s100 = sphi 0, %s97
    %s101 = sphi 0, %s100
    %s117 = sphi 0, %s101
    %s123 = sphi 0, %s125
    %s126 = sphi 0, %s123
    %s127 = sphi 0, %s126
    %s143 = sphi 0, %s127
    %s149 = sphi 0, %s151
    %s152 = sphi 0, %s149
    %s153 = sphi 0, %s152
    %s169 = sphi 0, %s153
  $region4: #{upsample_block_forward.2} parent=0 // loop_header_branch
    %15 = sbr.rel (%p13) target = $region8
  $region5: #{upsample_block_forward.2} parent=0 // loop_body
    %s17 = ssub.s32 %s12, 1
    %s18 = ssub.s32 %s12, 2
    %s19 = sadd.s32 %s12, 1
    %s20 = ssub.s32 %s12, %s19
    %p21 = scmp.eq.s32.totalorder %s20, 0
    %s23 = sadd.s32 %s22, 1
    %s24 = scalar_select %p21, %s22, %s23
    %p27 = pneg %p21
    %p28 = scmp.eq.s32.totalorder %s12, 4
    %p29 = por %p27, %p28
    %p30 = scmp.ne.s32.totalorder %s22, %s25
    %p31 = scmp.eq.s32.totalorder %s12, 0
    %p32 = por %p30, %p31
    %p33 = scmp.ne.s32.totalorder %s22, %s25
    %p34 = scmp.eq.s32.totalorder %s17, 4
    %p35 = por %p33, %p34
    %p36 = scmp.ne.s32.totalorder %s25, %s26
    %p37 = scmp.eq.s32.totalorder %s17, 0
    %p38 = por %p36, %p37
    %p39 = scmp.ne.s32.totalorder %s25, %s26
    %p40 = scmp.eq.s32.totalorder %s18, 4
    %p41 = por %p39, %p40
    %p43 = scmp.ne.s32.totalorder %s26, %s42
    %p44 = scmp.eq.s32.totalorder %s18, 0
    %p45 = por %p43, %p44
    %s46 = sadd.s32 %s12, 1
    %s47 = sadd.s32 %s19, 1
    %s48 = ssub.s32 %s46, %s47
    %p49 = scmp.eq.s32.totalorder %s48, 0
    %s51 = sadd.s32 %s50, 1
    %s52 = scalar_select %p49, %s50, %s51
    %p55 = pneg %p49
    %p56 = scmp.eq.s32.totalorder %s12, 4
    %p57 = por %p55, %p56
    %p58 = scmp.ne.s32.totalorder %s50, %s53
    %p59 = scmp.eq.s32.totalorder %s12, 0
    %p60 = por %p58, %p59
    %p61 = scmp.ne.s32.totalorder %s50, %s53
    %p62 = scmp.eq.s32.totalorder %s17, 4
    %p63 = por %p61, %p62
    %p64 = scmp.ne.s32.totalorder %s53, %s54
    %p65 = scmp.eq.s32.totalorder %s17, 0
    %p66 = por %p64, %p65
    %p67 = scmp.ne.s32.totalorder %s53, %s54
    %p68 = scmp.eq.s32.totalorder %s18, 4
    %p69 = por %p67, %p68
    %p71 = scmp.ne.s32.totalorder %s54, %s70
    %p72 = scmp.eq.s32.totalorder %s18, 0
    %p73 = por %p71, %p72
    %s75 = sadd.s32 %s74, 1
    %p78 = scmp.eq.s32.totalorder %s12, 4
    %p79 = scmp.ne.s32.totalorder %s74, %s76
    %p80 = scmp.eq.s32.totalorder %s12, 0
    %p81 = por %p79, %p80
    %p82 = scmp.ne.s32.totalorder %s74, %s76
    %p83 = scmp.eq.s32.totalorder %s17, 4
    %p84 = por %p82, %p83
    %p85 = scmp.ne.s32.totalorder %s76, %s77
    %p86 = scmp.eq.s32.totalorder %s17, 0
    %p87 = por %p85, %p86
    %p88 = scmp.ne.s32.totalorder %s76, %s77
    %p89 = scmp.eq.s32.totalorder %s18, 4
    %p90 = por %p88, %p89
    %p92 = scmp.ne.s32.totalorder %s77, %s91
    %p93 = scmp.eq.s32.totalorder %s18, 0
    %p94 = por %p92, %p93
    %s95 = ssub.s32 %s12, %s19
    %p96 = scmp.eq.s32.totalorder %s95, 0
    %s98 = sadd.s32 %s97, 1
    %s99 = scalar_select %p96, %s97, %s98
    %p102 = pneg %p96
    %p103 = scmp.eq.s32.totalorder %s12, 4
    %p104 = por %p102, %p103
    %p105 = scmp.ne.s32.totalorder %s97, %s100
    %p106 = scmp.eq.s32.totalorder %s12, 0
    %p107 = por %p105, %p106
    %p108 = scmp.ne.s32.totalorder %s97, %s100
    %p109 = scmp.eq.s32.totalorder %s17, 4
    %p110 = por %p108, %p109
    %p111 = scmp.ne.s32.totalorder %s100, %s101
    %p112 = scmp.eq.s32.totalorder %s17, 0
    %p113 = por %p111, %p112
    %p114 = scmp.ne.s32.totalorder %s100, %s101
    %p115 = scmp.eq.s32.totalorder %s18, 4
    %p116 = por %p114, %p115
    %p118 = scmp.ne.s32.totalorder %s101, %s117
    %p119 = scmp.eq.s32.totalorder %s18, 0
    %p120 = por %p118, %p119
    %s121 = ssub.s32 %s12, %s19
    %p122 = scmp.eq.s32.totalorder %s121, 0
    %s124 = sadd.s32 %s123, 1
    %s125 = scalar_select %p122, %s123, %s124
    %p128 = pneg %p122
    %p129 = scmp.eq.s32.totalorder %s12, 4
    %p130 = por %p128, %p129
    %p131 = scmp.ne.s32.totalorder %s123, %s126
    %p132 = scmp.eq.s32.totalorder %s12, 0
    %p133 = por %p131, %p132
    %p134 = scmp.ne.s32.totalorder %s123, %s126
    %p135 = scmp.eq.s32.totalorder %s17, 4
    %p136 = por %p134, %p135
    %p137 = scmp.ne.s32.totalorder %s126, %s127
    %p138 = scmp.eq.s32.totalorder %s17, 0
    %p139 = por %p137, %p138
    %p140 = scmp.ne.s32.totalorder %s126, %s127
    %p141 = scmp.eq.s32.totalorder %s18, 4
    %p142 = por %p140, %p141
    %p144 = scmp.ne.s32.totalorder %s127, %s143
    %p145 = scmp.eq.s32.totalorder %s18, 0
    %p146 = por %p144, %p145
    %s147 = ssub.s32 %s12, %s19
    %p148 = scmp.eq.s32.totalorder %s147, 0
    %s150 = sadd.s32 %s149, 1
    %s151 = scalar_select %p148, %s149, %s150
    %p154 = pneg %p148
    %p155 = scmp.eq.s32.totalorder %s12, 4
    %p156 = por %p154, %p155
    %p157 = scmp.ne.s32.totalorder %s149, %s152
    %p158 = scmp.eq.s32.totalorder %s12, 0
    %p159 = por %p157, %p158
    %p160 = scmp.ne.s32.totalorder %s149, %s152
    %p161 = scmp.eq.s32.totalorder %s17, 4
    %p162 = por %p160, %p161
    %p163 = scmp.ne.s32.totalorder %s152, %s153
    %p164 = scmp.eq.s32.totalorder %s17, 0
    %p165 = por %p163, %p164
    %p166 = scmp.ne.s32.totalorder %s152, %s153
    %p167 = scmp.eq.s32.totalorder %s18, 4
    %p168 = por %p166, %p167
    %p170 = scmp.ne.s32.totalorder %s153, %s169
    %p171 = scmp.eq.s32.totalorder %s18, 0
    %p172 = por %p170, %p171
    %p173 = scmp.le.s32.totalorder 1, %s12
    %p174 = scmp.lt.s32.totalorder %s12, 6
    %p175 = pnand %p173, %p174
    %p176 = pneg %p175
    // Predicated region
    $region9: #{upsample_block_forward.2} parent=5 // pred_check
      _
    $region10: #{upsample_block_forward.2} parent=5 // pred_check_branch
      %178 = sbr.rel (%p175) target = $region12
    $region11: #{upsample_block_forward.2} parent=5 // pred_region
      %s179 = ssub.s32 %s12, 1
      // Predicated region
      $region13: #{upsample_block_forward.2} parent=11 // pred_check
        %p180 = pneg %p87
      $region14: #{upsample_block_forward.2} parent=11 // pred_check_branch
        %182 = sbr.rel (%p180) target = $region16
      $region15: #{upsample_block_forward.2} parent=11 // pred_region
        _
      $region16: #{upsample_block_forward.2} parent=11 // pred_fallthru
        _
    $region12: #{upsample_block_forward.2} parent=5 // pred_fallthru
      _
    %p183 = scmp.lt.s32.totalorder %s12, 5
    // Predicated region
    $region17: #{upsample_block_forward.2} parent=5 // pred_check
      %p184 = pneg %p183
    $region18: #{upsample_block_forward.2} parent=5 // pred_check_branch
      %186 = sbr.rel (%p184) target = $region20
    $region19: #{upsample_block_forward.2} parent=5 // pred_region
      // Predicated region
      $region21: #{upsample_block_forward.2} parent=19 // pred_check
        %p187 = pneg %p32
      $region22: #{upsample_block_forward.2} parent=19 // pred_check_branch
        %189 = sbr.rel (%p187) target = $region24
      $region23: #{upsample_block_forward.2} parent=19 // pred_region
        %s190 = smul.u32 4, %s12
        %p191 = scmp.lt.s32.totalorder %s190, 23
        %s192 = scalar_select %p191, %s190, 23
        %s193 = smul.addr %s192, 4
        %s194 = scalar_lea.vmem %s0, %s193
        %s195 = smul.u32 4, %s12
      $region24: #{upsample_block_forward.2} parent=19 // pred_fallthru
        _
      // Predicated region
      $region25: #{upsample_block_forward.2} parent=19 // pred_check
        %p196 = pneg %p60
      $region26: #{upsample_block_forward.2} parent=19 // pred_check_branch
        %198 = sbr.rel (%p196) target = $region28
      $region27: #{upsample_block_forward.2} parent=19 // pred_region
        %s199 = sadd.s32 %s12, 1
        %s200 = smul.u32 4, %s199
        %p201 = scmp.lt.s32.totalorder %s200, 23
        %s202 = scalar_select %p201, %s200, 23
        %s203 = smul.addr %s202, 4
        %s204 = scalar_lea.vmem %s1, %s203
        %s205 = sadd.s32 %s12, 1
        %s206 = smul.u32 4, %s205
      $region28: #{upsample_block_forward.2} parent=19 // pred_fallthru
        _
      // Predicated region
      $region29: #{upsample_block_forward.2} parent=19 // pred_check
        %p207 = pneg %p107
      $region30: #{upsample_block_forward.2} parent=19 // pred_check_branch
        %209 = sbr.rel (%p207) target = $region32
      $region31: #{upsample_block_forward.2} parent=19 // pred_region
        %s210 = smul.u32 4, %s12
        %p211 = scmp.lt.s32.totalorder %s210, 19
        %s212 = scalar_select %p211, %s210, 19
        %s213 = scalar_lea.vmem %s3, %s212
        %s214 = smul.u32 4, %s12
      $region32: #{upsample_block_forward.2} parent=19 // pred_fallthru
        _
    $region20: #{upsample_block_forward.2} parent=5 // pred_fallthru
      _
    %p215 = scmp.le.s32.totalorder 1, %s12
    %p216 = scmp.lt.s32.totalorder %s12, 6
    %p217 = pnand %p215, %p216
    %p218 = pneg %p217
    // Predicated region
    $region33: #{upsample_block_forward.2} parent=5 // pred_check
      _
    $region34: #{upsample_block_forward.2} parent=5 // pred_check_branch
      %220 = sbr.rel (%p217) target = $region36
    $region35: #{upsample_block_forward.2} parent=5 // pred_region
      %s221 = ssub.s32 %s12, 1
      %s222 = smul.u32 4, %s17
      %p223 = scmp.lt.s32.totalorder %s222, 23
      %s224 = scalar_select %p223, %s222, 23
      %s225 = smul.addr %s224, 4
      %s226 = scalar_lea.vmem %s0, %s225
      %p227 = pneg %p38
      %p228 = pneg %p35
      %s229 = sadd.s32 %s17, 1
      %s230 = smul.u32 4, %s229
      %p231 = scmp.lt.s32.totalorder %s230, 23
      %s232 = scalar_select %p231, %s230, 23
      %s233 = smul.addr %s232, 4
      %s234 = scalar_lea.vmem %s1, %s233
      %p235 = pneg %p66
      %p236 = pneg %p63
      %p237 = pneg %p87
      %p238 = pneg %p84
      %s239 = smul.u32 4, %s17
      %p240 = scmp.lt.s32.totalorder %s239, 19
      %s241 = scalar_select %p240, %s239, 19
      %s242 = scalar_lea.vmem %s3, %s241
      %p243 = pneg %p113
      %p244 = pneg %p110
      %p245 = pneg %p139
      %p246 = pneg %p136
      %s247 = smul.u32 4, %s17
      %p248 = scmp.lt.s32.totalorder %s247, 19
      %s249 = scalar_select %p248, %s247, 19
      %s250 = smul.addr %s249, 8
      %s251 = scalar_lea.vmem %s4, %s250
      %p252 = pneg %p165
      %p253 = pneg %p162
      %p254 = scmp.lt.s32.totalorder %s17, 4
      %s255 = scalar_select %p254, %s17, 4
      %s256 = smul.addr %s255, 8
      %s257 = scalar_lea.vmem %s5, %s256
      %s258 = smul.u32 4, %s17
      %p259 = scmp.lt.s32.totalorder %s258, 23
      %s260 = scalar_select %p259, %s258, 23
      %s261 = smul.addr %s260, 4
      %s262 = scalar_lea.vmem %s0, %s261
      %s263 = smul.u32 4, %s17
      %s264 = sadd.s32 %s17, 1
      %s265 = smul.u32 4, %s264
      %p266 = scmp.lt.s32.totalorder %s265, 23
      %s267 = scalar_select %p266, %s265, 23
      %s268 = smul.addr %s267, 4
      %s269 = scalar_lea.vmem %s1, %s268
      %s270 = sadd.s32 %s17, 1
      %s271 = smul.u32 4, %s270
      %s272 = smul.u32 4, %s17
      %p273 = scmp.lt.s32.totalorder %s272, 19
      %s274 = scalar_select %p273, %s272, 19
      %s275 = scalar_lea.vmem %s3, %s274
      %s276 = smul.u32 4, %s17
      %s277 = smul.u32 4, %s17
      %p278 = scmp.lt.s32.totalorder %s277, 19
      %s279 = scalar_select %p278, %s277, 19
      %s280 = smul.addr %s279, 8
      %s281 = scalar_lea.vmem %s4, %s280
      %s282 = smul.u32 4, %s17
      %p283 = scmp.lt.s32.totalorder %s17, 4
      %s284 = scalar_select %p283, %s17, 4
      %s285 = smul.addr %s284, 8
      %s286 = scalar_lea.vmem %s5, %s285
      %v288 = vld [vmem:[%s262] sm:$0xff]
      %v289 = vld [vmem:[%s262 + $0x8] sm:$0xff]
      %v290 = vld [vmem:[%s269] sm:$0xff]
      %v293 = vcombine.high %v288, %v288
      %v294 = vcombine.high %v289, %v289
      %v298 = vrot.slane %v288, 4
      %v299 = vrot.slane %v293, 4
      %v300 = vrot.slane %v289, 4
      %v301 = vrot.slane %v294, 4
      %v302 = vrot.slane %v290, 4
      %303 = vrot.lane.b32.xlu0 %v298, 127
      %v304 = vpop.permute.xlu0 %303
      %305 = vrot.lane.b32.xlu0 %v299, 127
      %v306 = vpop.permute.xlu0 %305
      %307 = vrot.lane.b32.xlu0 %v300, 127
      %v308 = vpop.permute.xlu0 %307
      %309 = vrot.lane.b32.xlu0 %v301, 127
      %v310 = vpop.permute.xlu0 %309
      %311 = vrot.lane.b32.xlu0 %v302, 127
      %v312 = vpop.permute.xlu0 %311
      %vm313 = vcmask 1039360
      %v314 = vsel %vm313, %v304, %v306
      %v315 = vsel %vm313, %v306, %v308
      %v316 = vsel %vm313, %v308, %v310
      %v317 = vsel %vm313, %v310, %v312
      %322 = vrot.lane.b32.xlu0 %v288, 126
      %v323 = vpop.permute.xlu0 %322
      %324 = vrot.lane.b32.xlu0 %v293, 126
      %v325 = vpop.permute.xlu0 %324
      %326 = vrot.lane.b32.xlu0 %v289, 126
      %v327 = vpop.permute.xlu0 %326
      %328 = vrot.lane.b32.xlu0 %v294, 126
      %v329 = vpop.permute.xlu0 %328
      %330 = vrot.lane.b32.xlu0 %v290, 126
      %v331 = vpop.permute.xlu0 %330
      %vm332 = vcmask 1031168
      %v333 = vsel %vm332, %v323, %v325
      %v334 = vsel %vm332, %v325, %v327
      %v335 = vsel %vm332, %v327, %v329
      %v336 = vsel %vm332, %v329, %v331
      %341 = vrot.lane.b32.xlu0 %v298, 94
      %v342 = vpop.permute.xlu0 %341
      %343 = vrot.lane.b32.xlu0 %v299, 94
      %v344 = vpop.permute.xlu0 %343
      %345 = vrot.lane.b32.xlu0 %v300, 94
      %v346 = vpop.permute.xlu0 %345
      %347 = vrot.lane.b32.xlu0 %v301, 94
      %v348 = vpop.permute.xlu0 %347
      %349 = vrot.lane.b32.xlu0 %v302, 94
      %v350 = vpop.permute.xlu0 %349
      %vm351 = vcmask 769024
      %v352 = vsel %vm351, %v342, %v344
      %v353 = vsel %vm351, %v344, %v346
      %v354 = vsel %vm351, %v346, %v348
      %v355 = vsel %vm351, %v348, %v350
      %360 = vrot.lane.b32.xlu0 %v288, 93
      %v361 = vpop.permute.xlu0 %360
      %362 = vrot.lane.b32.xlu0 %v293, 93
      %v363 = vpop.permute.xlu0 %362
      %364 = vrot.lane.b32.xlu0 %v289, 93
      %v365 = vpop.permute.xlu0 %364
      %366 = vrot.lane.b32.xlu0 %v294, 93
      %v367 = vpop.permute.xlu0 %366
      %368 = vrot.lane.b32.xlu0 %v290, 93
      %v369 = vpop.permute.xlu0 %368
      %vm370 = vcmask 760832
      %v371 = vsel %vm370, %v361, %v363
      %v372 = vsel %vm370, %v363, %v365
      %v373 = vsel %vm370, %v365, %v367
      %v374 = vsel %vm370, %v367, %v369
      %379 = vrot.lane.b32.xlu0 %v298, 92
      %v380 = vpop.permute.xlu0 %379
      %381 = vrot.lane.b32.xlu0 %v299, 92
      %v382 = vpop.permute.xlu0 %381
      %383 = vrot.lane.b32.xlu0 %v300, 92
      %v384 = vpop.permute.xlu0 %383
      %385 = vrot.lane.b32.xlu0 %v301, 92
      %v386 = vpop.permute.xlu0 %385
      %387 = vrot.lane.b32.xlu0 %v302, 92
      %v388 = vpop.permute.xlu0 %387
      %vm389 = vcmask 752640
      %v390 = vsel %vm389, %v380, %v382
      %v391 = vsel %vm389, %v382, %v384
      %v392 = vsel %vm389, %v384, %v386
      %v393 = vsel %vm389, %v386, %v388
      %398 = vrot.lane.b32.xlu0 %v288, 60
      %v399 = vpop.permute.xlu0 %398
      %400 = vrot.lane.b32.xlu0 %v293, 60
      %v401 = vpop.permute.xlu0 %400
      %402 = vrot.lane.b32.xlu0 %v289, 60
      %v403 = vpop.permute.xlu0 %402
      %404 = vrot.lane.b32.xlu0 %v294, 60
      %v405 = vpop.permute.xlu0 %404
      %406 = vrot.lane.b32.xlu0 %v290, 60
      %v407 = vpop.permute.xlu0 %406
      %vm408 = vcmask 490496
      %v409 = vsel %vm408, %v399, %v401
      %v410 = vsel %vm408, %v401, %v403
      %v411 = vsel %vm408, %v403, %v405
      %v412 = vsel %vm408, %v405, %v407
      %417 = vrot.lane.b32.xlu0 %v298, 59
      %v418 = vpop.permute.xlu0 %417
      %419 = vrot.lane.b32.xlu0 %v299, 59
      %v420 = vpop.permute.xlu0 %419
      %421 = vrot.lane.b32.xlu0 %v300, 59
      %v422 = vpop.permute.xlu0 %421
      %423 = vrot.lane.b32.xlu0 %v301, 59
      %v424 = vpop.permute.xlu0 %423
      %425 = vrot.lane.b32.xlu0 %v302, 59
      %v426 = vpop.permute.xlu0 %425
      %vm427 = vcmask 482304
      %v428 = vsel %vm427, %v418, %v420
      %v429 = vsel %vm427, %v420, %v422
      %v430 = vsel %vm427, %v422, %v424
      %v431 = vsel %vm427, %v424, %v426
      %436 = vrot.lane.b32.xlu0 %v288, 58
      %v437 = vpop.permute.xlu0 %436
      %438 = vrot.lane.b32.xlu0 %v293, 58
      %v439 = vpop.permute.xlu0 %438
      %440 = vrot.lane.b32.xlu0 %v289, 58
      %v441 = vpop.permute.xlu0 %440
      %442 = vrot.lane.b32.xlu0 %v294, 58
      %v443 = vpop.permute.xlu0 %442
      %444 = vrot.lane.b32.xlu0 %v290, 58
      %v445 = vpop.permute.xlu0 %444
      %vm446 = vcmask 474112
      %v447 = vsel %vm446, %v437, %v439
      %v448 = vsel %vm446, %v439, %v441
      %v449 = vsel %vm446, %v441, %v443
      %v450 = vsel %vm446, %v443, %v445
      %vm455 = vcmask 1043456
      %v456 = vsel %vm455, %v288, %v314
      %v457 = vsel %vm455, %v293, %v315
      %v458 = vsel %vm455, %v289, %v316
      %v459 = vsel %vm455, %v294, %v317
      %v460 = vsel %vm455, %v333, %v352
      %v461 = vsel %vm455, %v334, %v353
      %v462 = vsel %vm455, %v335, %v354
      %v463 = vsel %vm455, %v336, %v355
      %v464 = vsel %vm455, %v371, %v390
      %v465 = vsel %vm455, %v372, %v391
      %v466 = vsel %vm455, %v373, %v392
      %v467 = vsel %vm455, %v374, %v393
      %v468 = vsel %vm455, %v409, %v428
      %v469 = vsel %vm455, %v410, %v429
      %v470 = vsel %vm455, %v411, %v430
      %v471 = vsel %vm455, %v412, %v431
      %v472 = vpack.c.bf16 %v460, %v456
      %v473 = vpack.c.bf16 %v461, %v457
      %v474 = vpack.c.bf16 %v462, %v458
      %v475 = vpack.c.bf16 %v463, %v459
      %v476 = vpack.c.bf16 %v468, %v464
      %v477 = vpack.c.bf16 %v469, %v465
      %v478 = vpack.c.bf16 %v470, %v466
      %v479 = vpack.c.bf16 %v471, %v467
      %v480 = vpack.c.bf16 %v447, %v447
      %v481 = vpack.c.bf16 %v448, %v448
      %v482 = vpack.c.bf16 %v449, %v449
      %v483 = vpack.c.bf16 %v450, %v450
      %v484 = vld [vmem:[%s2] sm:$0xf]
      %vm485 = vcmask 293888
      %v487 = vsel %vm485, %v484, 0
      %vm489 = vcmask 1041408
      %v491 = vsel %vm489, %v480, 0
      %v494 = vsel %vm489, %v481, 0
      %v497 = vsel %vm489, %v482, 0
      %v500 = vsel %vm489, %v483, 0
      %502 = vmatprep.subr.bf16.mxu0 %v473
      %503 = vmatpush1.bf16.msra.mxu0 %v472
      %504 = vmatprep.subr.bf16.mxu0 %v477
      %505 = vmatpush1.bf16.msra.mxu0 %v476
      %506 = vmatprep.subr.bf16.mxu0 %v494
      %507 = vmatpush1.bf16.msra.mxu0 %v491
      %508 = vmatprep.subr.bf16.mxu0 0
      %509 = vmatpush1.bf16.msra.mxu0 0
      %510 = vmatprep.subr.bf16.mxu0 0
      %511 = vmatpush1.bf16.msra.mxu0 0
      %512 = vmatprep.subr.bf16.mxu0 0
      %513 = vmatpush1.bf16.msra.mxu0 0
      %514 = vmatprep.subr.bf16.mxu0 0
      %515 = vmatpush1.bf16.msra.mxu0 0
      %516 = vmatprep.subr.bf16.mxu0 0
      %517 = vmatpush1.bf16.msra.mxu0 0
      %518 = vmatprep.subr.bf16.mxu0 0
      %519 = vmatpush1.bf16.msra.mxu0 0
      %520 = vmatprep.subr.bf16.mxu0 0
      %521 = vmatpush1.bf16.msra.mxu0 0
      %522 = vmatprep.subr.bf16.mxu0 0
      %523 = vmatpush1.bf16.msra.mxu0 0
      %524 = vmatprep.subr.bf16.mxu0 0
      %525 = vmatpush1.bf16.msra.mxu0 0
      %526 = vmatprep.subr.bf16.mxu0 0
      %527 = vmatpush1.bf16.msra.mxu0 0
      %528 = vmatprep.subr.bf16.mxu0 0
      %529 = vmatpush1.bf16.msra.mxu0 0
      %530 = vmatprep.subr.bf16.mxu0 0
      %531 = vmatpush1.bf16.msra.mxu0 0
      %532 = vmatprep.subr.bf16.mxu0 0
      %533 = vmatpush1.bf16.msra.mxu0 0
      %534 = vmatprep.mubr.bf16.mxu0 0
      %535 = vmatmul.mubr.bf16.gmra.mrb[0].mxu0 %v487
      %v536 = vpop.f32.mrb[0].mxu0
      %v537 = vadd.f32 0.0, %v536
      %v538 = vpop.f32.mrb[0].mxu0
      %v539 = vadd.f32 0.0, %v538
      %v540 = vpop.f32.mrb[0].mxu0
      %v541 = vpop.f32.mrb[0].mxu0
      %542 = vdwg.mxu0
      %543 = vmatprep.subr.bf16.mxu0 %v475
      %544 = vmatpush1.bf16.msra.mxu0 %v474
      %545 = vmatprep.subr.bf16.mxu0 %v479
      %546 = vmatpush1.bf16.msra.mxu0 %v478
      %547 = vmatprep.subr.bf16.mxu0 %v500
      %548 = vmatpush1.bf16.msra.mxu0 %v497
      %549 = vmatprep.subr.bf16.mxu0 0
      %550 = vmatpush1.bf16.msra.mxu0 0
      %551 = vmatprep.subr.bf16.mxu0 0
      %552 = vmatpush1.bf16.msra.mxu0 0
      %553 = vmatprep.subr.bf16.mxu0 0
      %554 = vmatpush1.bf16.msra.mxu0 0
      %555 = vmatprep.subr.bf16.mxu0 0
      %556 = vmatpush1.bf16.msra.mxu0 0
      %557 = vmatprep.subr.bf16.mxu0 0
      %558 = vmatpush1.bf16.msra.mxu0 0
      %559 = vmatprep.subr.bf16.mxu0 0
      %560 = vmatpush1.bf16.msra.mxu0 0
      %561 = vmatprep.subr.bf16.mxu0 0
      %562 = vmatpush1.bf16.msra.mxu0 0
      %563 = vmatprep.subr.bf16.mxu0 0
      %564 = vmatpush1.bf16.msra.mxu0 0
      %565 = vmatprep.subr.bf16.mxu0 0
      %566 = vmatpush1.bf16.msra.mxu0 0
      %567 = vmatprep.subr.bf16.mxu0 0
      %568 = vmatpush1.bf16.msra.mxu0 0
      %569 = vmatprep.subr.bf16.mxu0 0
      %570 = vmatpush1.bf16.msra.mxu0 0
      %571 = vmatprep.subr.bf16.mxu0 0
      %572 = vmatpush1.bf16.msra.mxu0 0
      %573 = vmatprep.subr.bf16.mxu0 0
      %574 = vmatpush1.bf16.msra.mxu0 0
      %575 = vmatprep.mubr.bf16.mxu0 0
      %576 = vmatmul.mubr.bf16.gmra.mrb[0].mxu0 %v487
      %v577 = vpop.f32.mrb[0].mxu0
      %v578 = vadd.f32 0.0, %v577
      %v579 = vpop.f32.mrb[0].mxu0
      %v580 = vadd.f32 0.0, %v579
      %v581 = vpop.f32.mrb[0].mxu0
      %v582 = vpop.f32.mrb[0].mxu0
      %583 = vdwg.mxu0
      %v584 = vld [vmem:[%s275] sm:$0xf]
      %v586 = vlaneseq
      %v587 = vshrl.u32 %v586, 7
      %v588 = vsub.s32 0, %v587
      %v589 = vrot.slane %v584, %v588
      %v590 = vlaneseq
      %v591 = vshrl.u32 %v590, 7
      %v592 = vsub.s32 1, %v591
      %v593 = vrot.slane %v584, %v592
      %v594 = vlaneseq
      %v595 = vshrl.u32 %v594, 7
      %v596 = vsub.s32 2, %v595
      %v597 = vrot.slane %v584, %v596
      %v598 = vlaneseq
      %v599 = vshrl.u32 %v598, 7
      %v600 = vsub.s32 3, %v599
      %v601 = vrot.slane %v584, %v600
      %v606 = vmul.f32 %v537, %v589
      %v607 = vmul.f32 %v539, %v593
      %v608 = vmul.f32 %v578, %v597
      %v609 = vmul.f32 %v580, %v601
      %610 = vst [vmem:[%s281] sm:$0xff] %v606
      %611 = vst [vmem:[%s281 + $0x8] sm:$0xff] %v607
      %612 = vst [vmem:[%s281 + $0x10] sm:$0xff] %v608
      %613 = vst [vmem:[%s281 + $0x18] sm:$0xff] %v609
      %v614 = vadd.f32 %v606, %v607
      %v615 = vadd.f32 %v614, %v608
      %v616 = vadd.f32 %v615, %v609
      %617 = vadd.xlane.f32.xlu0 %v616
      %v618 = vpop.xlane.xlu0 %617
      %v619 = vmul.f32 %v606, %v606
      %v620 = vmul.f32 %v607, %v607
      %v621 = vmul.f32 %v608, %v608
      %v622 = vmul.f32 %v609, %v609
      %v623 = vadd.f32 %v619, %v620
      %v624 = vadd.f32 %v623, %v621
      %v625 = vadd.f32 %v624, %v622
      %626 = vadd.xlane.f32.xlu0 %v625
      %v627 = vpop.xlane.xlu0 %626
      %vm628 = vcmask 7168
      %v629 = vsel %vm628, %v618, %v627
      %vm630 = vcmask 15360
      %631 = vst.msk [vmem:[%s286] sm:$0xff] %vm630, %v629
      %s632 = smul.u32 4, %s17
      %p633 = scmp.lt.s32.totalorder %s632, 19
      %s634 = scalar_select %p633, %s632, 19
      %s635 = smul.addr %s634, 8
      %s636 = scalar_lea.vmem %s4, %s635
      %p637 = scmp.lt.s32.totalorder %s17, 4
      %s638 = scalar_select %p637, %s17, 4
      %s639 = smul.addr %s638, 8
      %s640 = scalar_lea.vmem %s5, %s639
      // Predicated region
      $region37: #{upsample_block_forward.2} parent=35 // pred_check
        %p641 = pneg %p136
      $region38: #{upsample_block_forward.2} parent=35 // pred_check_branch
        %643 = sbr.rel (%p641) target = $region40
      $region39: #{upsample_block_forward.2} parent=35 // pred_region
        %s644 = smul.u32 4, %s17
      $region40: #{upsample_block_forward.2} parent=35 // pred_fallthru
        _
      // Predicated region
      $region41: #{upsample_block_forward.2} parent=35 // pred_check
        %p645 = pneg %p162
      $region42: #{upsample_block_forward.2} parent=35 // pred_check_branch
        %647 = sbr.rel (%p645) target = $region44
      $region43: #{upsample_block_forward.2} parent=35 // pred_region
        _
      $region44: #{upsample_block_forward.2} parent=35 // pred_fallthru
        _
    $region36: #{upsample_block_forward.2} parent=5 // pred_fallthru
      _
    %p648 = scmp.le.s32.totalorder 2, %s12
    // Predicated region
    $region45: #{upsample_block_forward.2} parent=5 // pred_check
      %p649 = pneg %p648
    $region46: #{upsample_block_forward.2} parent=5 // pred_check_branch
      %651 = sbr.rel (%p649) target = $region48
    $region47: #{upsample_block_forward.2} parent=5 // pred_region
      %s652 = ssub.s32 %s12, 2
      // Predicated region
      $region49: #{upsample_block_forward.2} parent=47 // pred_check
        %p653 = pneg %p142
      $region50: #{upsample_block_forward.2} parent=47 // pred_check_branch
        %655 = sbr.rel (%p653) target = $region52
      $region51: #{upsample_block_forward.2} parent=47 // pred_region
        %s656 = smul.u32 4, %s18
        %p657 = scmp.lt.s32.totalorder %s656, 19
        %s658 = scalar_select %p657, %s656, 19
        %s659 = smul.addr %s658, 8
        %s660 = scalar_lea.vmem %s4, %s659
      $region52: #{upsample_block_forward.2} parent=47 // pred_fallthru
        _
      // Predicated region
      $region53: #{upsample_block_forward.2} parent=47 // pred_check
        %p661 = pneg %p168
      $region54: #{upsample_block_forward.2} parent=47 // pred_check_branch
        %663 = sbr.rel (%p661) target = $region56
      $region55: #{upsample_block_forward.2} parent=47 // pred_region
        %p664 = scmp.lt.s32.totalorder %s18, 4
        %s665 = scalar_select %p664, %s18, 4
        %s666 = smul.addr %s665, 8
        %s667 = scalar_lea.vmem %s5, %s666
      $region56: #{upsample_block_forward.2} parent=47 // pred_fallthru
        _
    $region48: #{upsample_block_forward.2} parent=5 // pred_fallthru
      _
  $region6: #{upsample_block_forward.2} parent=0 // loop_footer
    %s16 = sadd.s32 1, %s12
  $region7: #{upsample_block_forward.2} parent=0 // loop_footer_branch
    %11 = sbr.rel target = $region3
  $region8: #{upsample_block_forward.2} parent=0 // loop_exit
    _

</llo_original>
